<compile_context>
chip_gen: v6e
topology: v6e:2x2x1
jax: 0.10.0
libtpu: 0.0.40
codegen_flags: <defaults>
</compile_context>

<pallas_src>
import functools

import jax
import jax.numpy as jnp
from jax.experimental import pallas as pl
from jax.experimental.pallas import tpu as pltpu

INPUT_DIM = 7
HIDDEN_DIMS = [10, 20, 5]

# Batches at or below this run as a single full-array block (block dims equal
# the array dims, so no 128-lane divisibility requirement applies).
_SINGLE_BLOCK_MAX = 1024
# Module-interface wrapper skips the pallas_call entirely below this batch.
_SMALL_BATCH_FAST_PATH = 512


def _round_up(x, m):
    return ((x + m - 1) // m) * m


def _pick_batch_tile(batch, block_batch):
    """Pick the batch-tile (lane-axis) size for the feature-major kernel."""
    if batch <= _SINGLE_BLOCK_MAX:
        return batch
    # Multiple of 512 (lane/MXU friendly), bounded by block_batch, and capped
    # so there are at least 2 grid blocks (keeps both v7x TensorCores busy).
    block_batch = max(512, (block_batch // 512) * 512)
    half_batch = _round_up(pl.cdiv(batch, 2), 512)
    return min(block_batch, half_batch)


def _mlp_kernel(x_ref, w1_ref, b1_ref, w2_ref, b2_ref, w3_ref, b3_ref, o_ref):
    """One batch tile, feature-major. x_ref: (IN, TB); o_ref: (OUT, TB)."""
    x = x_ref[...].astype(jnp.bfloat16)                              # (7,  TB)

    # Layer 1: Linear(7 -> 10) + ReLU   (bf16 MXU matmul, f32 accumulate)
    h1 = jnp.dot(w1_ref[...], x, preferred_element_type=jnp.float32)
    h1 = jnp.maximum(h1 + b1_ref[...], 0.0).astype(jnp.bfloat16)     # (10, TB)

    # Layer 2: Linear(10 -> 20) + ReLU
    h2 = jnp.dot(w2_ref[...], h1, preferred_element_type=jnp.float32)
    h2 = jnp.maximum(h2 + b2_ref[...], 0.0).astype(jnp.bfloat16)     # (20, TB)

    # Layer 3: Linear(20 -> 5), no activation; output stays f32.
    out = jnp.dot(w3_ref[...], h2, preferred_element_type=jnp.float32)
    o_ref[...] = (out + b3_ref[...]).astype(o_ref.dtype)             # (5,  TB)


@functools.partial(jax.jit, static_argnames=("block_batch",))
def mlp_forward_feature_major(x_t, params, *, block_batch=32768):
    """Core Pallas path, no layout plumbing.

    x_t:    (INPUT_DIM, batch)  float32 or bfloat16 (feature-major)
    params: [(W, b)] with W (out, in) bf16, b (out, 1) f32
    returns (HIDDEN_DIMS[-1], batch) float32 (feature-major)
    """
    (w1, b1), (w2, b2), (w3, b3) = params
    in_dim, batch = x_t.shape
    out_dim = w3.shape[0]

    tb = _pick_batch_tile(batch, block_batch)
    num_blocks = pl.cdiv(batch, tb)

    batch_tile = lambda i: (0, i)        # x / out move along the batch axis
    resident = lambda i: (0, 0)          # weights/biases: DMA'd once, resident
    full = lambda a: pl.BlockSpec(a.shape, resident)

    flops = 2 * batch * (7 * 10 + 10 * 20 + 20 * 5)
    bytes_accessed = (
        batch * in_dim * jnp.dtype(x_t.dtype).itemsize      # x
        + batch * out_dim * 4                                # f32 output
        + (7 * 10 + 10 * 20 + 20 * 5) * 2                    # bf16 weights
        + (10 + 20 + 5) * 4                                  # f32 biases
    )

    return pl.pallas_call(
        _mlp_kernel,
        out_shape=jax.ShapeDtypeStruct((out_dim, batch), jnp.float32),
        grid_spec=pl.GridSpec(
            grid=(num_blocks,),
            in_specs=[
                pl.BlockSpec((in_dim, tb), batch_tile),
                full(w1), full(b1), full(w2), full(b2), full(w3), full(b3),
            ],
            out_specs=pl.BlockSpec((out_dim, tb), batch_tile),
        ),
        compiler_params=pltpu.CompilerParams(
            dimension_semantics=("parallel",),
            vmem_limit_bytes=48 * 1024 * 1024,
        ),
        cost_estimate=pl.CostEstimate(
            flops=flops, bytes_accessed=bytes_accessed, transcendentals=0),
    )(x_t, w1, b1, w2, b2, w3, b3)


@functools.partial(jax.jit, static_argnames=("block_batch",))
def mlp_forward(x, params, *, block_batch=32768):
    """Module-compatible interface: x (batch, 7) -> (batch, 5) float32.

    Small batches take a fused plain-XLA path (kernel launch + transposes only
    slow them down).  Large batches route through the feature-major Pallas
    kernel; callers that can produce/consume feature-major activations should
    call `mlp_forward_feature_major` directly and skip the two transposes.
    """
    batch = x.shape[0]
    if batch < _SMALL_BATCH_FAST_PATH:
        h = x
        for i, (w, b) in enumerate(params):
            h = jnp.dot(h.astype(jnp.bfloat16), w.T,
                        preferred_element_type=jnp.float32) + b.T
            if i < len(params) - 1:
                h = jnp.maximum(h, 0.0)
        return h
    out_t = mlp_forward_feature_major(x.T, params, block_batch=block_batch)
    return out_t.T


def init_params(key, input_dim=INPUT_DIM, hidden_dims=HIDDEN_DIMS):
    """Deterministic init mimicking nn.Linear's uniform(-1/sqrt(fan_in), ...).

    Weights stored as (out, in) bf16 (feature-major kernel, bf16 MXU inputs);
    biases stored as (out, 1) f32 (bias-add / ReLU epilogue stays f32).
    """
    params = []
    dims = [input_dim] + list(hidden_dims)
    for i in range(len(hidden_dims)):
        fan_in, fan_out = dims[i], dims[i + 1]
        key, kw, kb = jax.random.split(key, 3)
        bound = 1.0 / (fan_in ** 0.5)
        w = jax.random.uniform(kw, (fan_out, fan_in), jnp.float32, -bound, bound)
        b = jax.random.uniform(kb, (fan_out, 1), jnp.float32, -bound, bound)
        params.append((w.astype(jnp.bfloat16), b))
    return params


def mlp_reference(x, params):
    """Pure-JAX reference emulating the kernel's bf16 matmul inputs."""
    h = x
    for i, (w, b) in enumerate(params):
        h = jnp.dot(h.astype(jnp.bfloat16), w.astype(jnp.bfloat16).T,
                    preferred_element_type=jnp.float32) + b.T
        if i < len(params) - 1:
            h = jnp.maximum(h, 0.0)
    return h


if __name__ == "__main__":
    key = jax.random.PRNGKey(0)
    key, k_small, k_big = jax.random.split(key, 3)
    params = init_params(key)

    # --- Small-shape check (module-style batch of 8): run the Pallas kernel
    # directly via the feature-major entry point (single full-array block).
    batch = 8
    x = jax.random.normal(k_small, (batch, INPUT_DIM), dtype=jnp.float32)
    out_t = jax.block_until_ready(mlp_forward_feature_major(x.T, params))
    out = out_t.T
    ref = mlp_reference(x, params)
    assert out.shape == (batch, HIDDEN_DIMS[-1])
    assert jnp.allclose(out, ref, atol=1e-2, rtol=1e-2), "pallas vs reference mismatch"

    # --- Multi-block grid path (2 batch tiles) through the module-compatible
    # wrapper, still a small problem size.
    batch2 = 2048
    x2 = jax.random.normal(k_big, (batch2, INPUT_DIM), dtype=jnp.float32)
    out2 = jax.block_until_ready(mlp_forward(x2, params))
    ref2 = mlp_reference(x2, params)
    assert out2.shape == (batch2, HIDDEN_DIMS[-1])
    assert jnp.allclose(out2, ref2, atol=1e-2, rtol=1e-2), "tiled pallas vs reference mismatch"

    print("KERNEL_OK")
</pallas_src>

<mosaic_0001>
module attributes {stable_mosaic.version = 11 : i64} {
  func.func @_mlp_kernel(%arg0: i32, %arg1: memref<7x8xf32, #tpu.memory_space<vmem>>, %arg2: memref<10x7xbf16, #tpu.memory_space<vmem>>, %arg3: memref<10x1xf32, #tpu.memory_space<vmem>>, %arg4: memref<20x10xbf16, #tpu.memory_space<vmem>>, %arg5: memref<20x1xf32, #tpu.memory_space<vmem>>, %arg6: memref<5x20xbf16, #tpu.memory_space<vmem>>, %arg7: memref<5x1xf32, #tpu.memory_space<vmem>>, %arg8: memref<5x8xf32, #tpu.memory_space<vmem>>) attributes {dimension_semantics = [#tpu.dimension_semantics<parallel>], iteration_bounds = array<i64: 1>, scalar_prefetch = 0 : i64, scratch_operands = 0 : i64, tpu.core_type = #tpu.core_type<tc>, window_params = [{transform_indices = @transform_0, window_bounds = array<i64: 7, 8>}, {pipeline_mode = #tpu.pipeline_mode<synchronous>, transform_indices = @transform_1, window_bounds = array<i64: 10, 7>}, {pipeline_mode = #tpu.pipeline_mode<synchronous>, transform_indices = @transform_2, window_bounds = array<i64: 10, 1>}, {pipeline_mode = #tpu.pipeline_mode<synchronous>, transform_indices = @transform_3, window_bounds = array<i64: 20, 10>}, {pipeline_mode = #tpu.pipeline_mode<synchronous>, transform_indices = @transform_4, window_bounds = array<i64: 20, 1>}, {pipeline_mode = #tpu.pipeline_mode<synchronous>, transform_indices = @transform_5, window_bounds = array<i64: 5, 20>}, {pipeline_mode = #tpu.pipeline_mode<synchronous>, transform_indices = @transform_6, window_bounds = array<i64: 5, 1>}, {transform_indices = @transform_7, window_bounds = array<i64: 5, 8>}]} {
    %c0 = arith.constant 0 : index
    %c0_0 = arith.constant 0 : index
    %0 = vector.load %arg1[%c0, %c0_0] : memref<7x8xf32, #tpu.memory_space<vmem>>, vector<7x8xf32>
    %1 = arith.truncf %0 : vector<7x8xf32> to vector<7x8xbf16>
    %c0_1 = arith.constant 0 : index
    %c0_2 = arith.constant 0 : index
    %2 = vector.load %arg2[%c0_1, %c0_2] : memref<10x7xbf16, #tpu.memory_space<vmem>>, vector<10x7xbf16>
    %cst = arith.constant dense<0.000000e+00> : vector<10x8xf32>
    %3 = tpu.matmul %2, %1, %cst {dimension_numbers = #tpu.dot_dimension_numbers<[1], [0], [0], [1], [0, 0, 1, 1], [], []>} : vector<10x7xbf16>, vector<7x8xbf16>, vector<10x8xf32> -> vector<10x8xf32>
    %c0_3 = arith.constant 0 : index
    %c0_4 = arith.constant 0 : index
    %4 = vector.load %arg3[%c0_3, %c0_4] : memref<10x1xf32, #tpu.memory_space<vmem>>, vector<10x1xf32>
    %5 = vector.broadcast %4 : vector<10x1xf32> to vector<10x8xf32>
    %6 = arith.addf %3, %5 : vector<10x8xf32>
    %cst_5 = arith.constant 0.000000e+00 : f32
    %7 = vector.broadcast %cst_5 : f32 to vector<10x8xf32>
    %8 = arith.maximumf %6, %7 : vector<10x8xf32>
    %9 = arith.truncf %8 : vector<10x8xf32> to vector<10x8xbf16>
    %c0_6 = arith.constant 0 : index
    %c0_7 = arith.constant 0 : index
    %10 = vector.load %arg4[%c0_6, %c0_7] : memref<20x10xbf16, #tpu.memory_space<vmem>>, vector<20x10xbf16>
    %cst_8 = arith.constant dense<0.000000e+00> : vector<20x8xf32>
    %11 = tpu.matmul %10, %9, %cst_8 {dimension_numbers = #tpu.dot_dimension_numbers<[1], [0], [0], [1], [0, 0, 1, 1], [], []>} : vector<20x10xbf16>, vector<10x8xbf16>, vector<20x8xf32> -> vector<20x8xf32>
    %c0_9 = arith.constant 0 : index
    %c0_10 = arith.constant 0 : index
    %12 = vector.load %arg5[%c0_9, %c0_10] : memref<20x1xf32, #tpu.memory_space<vmem>>, vector<20x1xf32>
    %13 = vector.broadcast %12 : vector<20x1xf32> to vector<20x8xf32>
    %14 = arith.addf %11, %13 : vector<20x8xf32>
    %cst_11 = arith.constant 0.000000e+00 : f32
    %15 = vector.broadcast %cst_11 : f32 to vector<20x8xf32>
    %16 = arith.maximumf %14, %15 : vector<20x8xf32>
    %17 = arith.truncf %16 : vector<20x8xf32> to vector<20x8xbf16>
    %c0_12 = arith.constant 0 : index
    %c0_13 = arith.constant 0 : index
    %18 = vector.load %arg6[%c0_12, %c0_13] : memref<5x20xbf16, #tpu.memory_space<vmem>>, vector<5x20xbf16>
    %cst_14 = arith.constant dense<0.000000e+00> : vector<5x8xf32>
    %19 = tpu.matmul %18, %17, %cst_14 {dimension_numbers = #tpu.dot_dimension_numbers<[1], [0], [0], [1], [0, 0, 1, 1], [], []>} : vector<5x20xbf16>, vector<20x8xbf16>, vector<5x8xf32> -> vector<5x8xf32>
    %c0_15 = arith.constant 0 : index
    %c0_16 = arith.constant 0 : index
    %20 = vector.load %arg7[%c0_15, %c0_16] : memref<5x1xf32, #tpu.memory_space<vmem>>, vector<5x1xf32>
    %21 = vector.broadcast %20 : vector<5x1xf32> to vector<5x8xf32>
    %22 = arith.addf %19, %21 : vector<5x8xf32>
    %c0_17 = arith.constant 0 : index
    %c0_18 = arith.constant 0 : index
    %23 = vector.load %arg8[%c0_17, %c0_18] : memref<5x8xf32, #tpu.memory_space<vmem>>, vector<5x8xf32>
    tpu.vector_store %arg8[%c0_17, %c0_18], %22 {strides = array<i32>} : memref<5x8xf32, #tpu.memory_space<vmem>>, vector<5x8xf32>,
    return
  }
  func.func @transform_0(%arg0: i32) -> (i32, i32) {
    %c0_i32 = arith.constant 0 : i32
    %c0_i32_0 = arith.constant 0 : i32
    return %c0_i32, %arg0 : i32, i32
  }
  func.func @transform_1(%arg0: i32) -> (i32, i32) {
    %c0_i32 = arith.constant 0 : i32
    %c0_i32_0 = arith.constant 0 : i32
    %c0_i32_1 = arith.constant 0 : i32
    return %c0_i32, %c0_i32_0 : i32, i32
  }
  func.func @transform_2(%arg0: i32) -> (i32, i32) {
    %c0_i32 = arith.constant 0 : i32
    %c0_i32_0 = arith.constant 0 : i32
    %c0_i32_1 = arith.constant 0 : i32
    return %c0_i32, %c0_i32_0 : i32, i32
  }
  func.func @transform_3(%arg0: i32) -> (i32, i32) {
    %c0_i32 = arith.constant 0 : i32
    %c0_i32_0 = arith.constant 0 : i32
    %c0_i32_1 = arith.constant 0 : i32
    return %c0_i32, %c0_i32_0 : i32, i32
  }
  func.func @transform_4(%arg0: i32) -> (i32, i32) {
    %c0_i32 = arith.constant 0 : i32
    %c0_i32_0 = arith.constant 0 : i32
    %c0_i32_1 = arith.constant 0 : i32
    return %c0_i32, %c0_i32_0 : i32, i32
  }
  func.func @transform_5(%arg0: i32) -> (i32, i32) {
    %c0_i32 = arith.constant 0 : i32
    %c0_i32_0 = arith.constant 0 : i32
    %c0_i32_1 = arith.constant 0 : i32
    return %c0_i32, %c0_i32_0 : i32, i32
  }
  func.func @transform_6(%arg0: i32) -> (i32, i32) {
    %c0_i32 = arith.constant 0 : i32
    %c0_i32_0 = arith.constant 0 : i32
    %c0_i32_1 = arith.constant 0 : i32
    return %c0_i32, %c0_i32_0 : i32, i32
  }
  func.func @transform_7(%arg0: i32) -> (i32, i32) {
    %c0_i32 = arith.constant 0 : i32
    %c0_i32_0 = arith.constant 0 : i32
    return %c0_i32, %arg0 : i32, i32
  }
}

</mosaic_0001>

<llo_original>
// kernel: mlp_forward_feature_major.1
$region0: #{mlp_forward_feature_major.1}
  #allocation0 [shape = 'u32[]', space=smem, size = 0x4, offset = 0x4, fixed_abs, tag = 'smem constant byte address 0x4 - core index']
  #allocation1 [shape = 'u32[144,128]{1,0:T(1,128)}', space=vmem, size = 0x12000, scoped, tag = 'internal scratch']
  %s0 = inlined_call_operand.vmem [shape: f32[7,8], index: 0, kind: input, shape index: {}]
  %s1 = inlined_call_operand.vmem [shape: bf16[10,7], index: 1, kind: input, shape index: {}]
  %s2 = inlined_call_operand.vmem [shape: f32[10,1], index: 2, kind: input, shape index: {}]
  %s3 = inlined_call_operand.vmem [shape: bf16[20,10], index: 3, kind: input, shape index: {}]
  %s4 = inlined_call_operand.vmem [shape: f32[20,1], index: 4, kind: input, shape index: {}]
  %s5 = inlined_call_operand.vmem [shape: bf16[5,20], index: 5, kind: input, shape index: {}]
  %s6 = inlined_call_operand.vmem [shape: f32[5,1], index: 6, kind: input, shape index: {}]
  %s7 = inlined_call_operand.hbm [shape: f32[5,8], index: 7, kind: output, shape index: {}]
  %s8 = sld [smem:[#allocation0]]
  $region38: #{mlp_forward_feature_major.1} parent=0
    _
  %s10 = ssub.s32 1, %s8
  %s11 = scalar_select 0, %s10, %s8
  $region1: #{mlp_forward_feature_major.1} parent=0
    #allocation2 [shape = 'u8[4096]{0}', space=vmem, size = 0x1000, scoped, tag = 'output window, operand 0, single buffered']
    #allocation3 [shape = 's32[1]{0}', space=sflag, size = 0x4, scoped, tag = 'scoped memory for mlp_forward_feature_major.1']
    %12 = vsyncpa [#allocation3], 0
    // Predicated region
    $region2: #{mlp_forward_feature_major.1} parent=1 // pred_check
      _
    $region3: #{mlp_forward_feature_major.1} parent=1 // pred_check_branch
      %14 = sbr.rel (0) target = $region5
    $region4: #{mlp_forward_feature_major.1} parent=1 // pred_region
      _
    $region5: #{mlp_forward_feature_major.1} parent=1 // pred_fallthru
      _
    // Predicated region
    $region6: #{mlp_forward_feature_major.1} parent=1 // pred_check
      _
    $region7: #{mlp_forward_feature_major.1} parent=1 // pred_check_branch
      %16 = sbr.rel (0) target = $region9
    $region8: #{mlp_forward_feature_major.1} parent=1 // pred_region
      _
    $region9: #{mlp_forward_feature_major.1} parent=1 // pred_fallthru
      _
    // Predicated region
    $region10: #{mlp_forward_feature_major.1} parent=1 // pred_check
      _
    $region11: #{mlp_forward_feature_major.1} parent=1 // pred_check_branch
      %18 = sbr.rel (0) target = $region13
    $region12: #{mlp_forward_feature_major.1} parent=1 // pred_region
      _
    $region13: #{mlp_forward_feature_major.1} parent=1 // pred_fallthru
      _
    // Predicated region
    $region14: #{mlp_forward_feature_major.1} parent=1 // pred_check
      _
    $region15: #{mlp_forward_feature_major.1} parent=1 // pred_check_branch
      %20 = sbr.rel (0) target = $region17
    $region16: #{mlp_forward_feature_major.1} parent=1 // pred_region
      _
    $region17: #{mlp_forward_feature_major.1} parent=1 // pred_fallthru
      _
    // Predicated region
    $region18: #{mlp_forward_feature_major.1} parent=1 // pred_check
      _
    $region19: #{mlp_forward_feature_major.1} parent=1 // pred_check_branch
      %22 = sbr.rel (0) target = $region21
    $region20: #{mlp_forward_feature_major.1} parent=1 // pred_region
      _
    $region21: #{mlp_forward_feature_major.1} parent=1 // pred_fallthru
      _
    // Predicated region
    $region22: #{mlp_forward_feature_major.1} parent=1 // pred_check
      _
    $region23: #{mlp_forward_feature_major.1} parent=1 // pred_check_branch
      %24 = sbr.rel (0) target = $region25
    $region24: #{mlp_forward_feature_major.1} parent=1 // pred_region
      _
    $region25: #{mlp_forward_feature_major.1} parent=1 // pred_fallthru
      _
    // Predicated region
    $region26: #{mlp_forward_feature_major.1} parent=1 // pred_check
      _
    $region27: #{mlp_forward_feature_major.1} parent=1 // pred_check_branch
      %26 = sbr.rel (0) target = $region29
    $region28: #{mlp_forward_feature_major.1} parent=1 // pred_region
      _
    $region29: #{mlp_forward_feature_major.1} parent=1 // pred_fallthru
      _
    %v28 = vld [vmem:[%s0] sm:$0x7f]
    %v29 = vpack.c.bf16 %v28, %v28
    %v30 = vld [vmem:[%s1] sm:$0xf]
    %v31 = vld [vmem:[%s1 + $0x4] sm:$0x1]
    %v32 = vld [vmem:[%s2] sm:$0xff]
    %v33 = vld [vmem:[%s2 + $0x8] sm:$0x3]
    %35 = vset.pattern.permute.xlu0 0
    %36 = vperm.xlu0 %35, %v32
    %v37 = vpop.permute.xlu0 %36
    %40 = vset.pattern.permute.xlu0 0
    %41 = vperm.xlu0 %40, %v33
    %v42 = vpop.permute.xlu0 %41
    %v46 = vunpack.c.l.b16 %v30
    %v47 = vunpack.c.l.b16 %v31
    %v48 = vpack.c.b16 %v47, %v46
    %vm49 = vcmask 56320
    %v51 = vsel %vm49, %v48, 0
    %vm53 = vcmask 1042432
    %vm54 = vcmask 1043456
    %v55 = vsel %vm53, 4294967295, 65535
    %v56 = vsel %vm54, %v55, 0
    %v58 = vand.u32 %v29, %v56
    %60 = vmatprep.subr.bf16.mxu0 0
    %61 = vmatpush1.bf16.msra.mxu0 0
    %62 = vmatprep.subr.bf16.mxu0 0
    %63 = vmatpush1.bf16.msra.mxu0 0
    %64 = vmatprep.subr.bf16.mxu0 0
    %65 = vmatpush1.bf16.msra.mxu0 0
    %66 = vmatprep.subr.bf16.mxu0 0
    %67 = vmatpush1.bf16.msra.mxu0 0
    %68 = vmatprep.subr.bf16.mxu0 0
    %69 = vmatpush1.bf16.msra.mxu0 0
    %70 = vmatprep.subr.bf16.mxu0 0
    %71 = vmatpush1.bf16.msra.mxu0 0
    %72 = vmatprep.subr.bf16.mxu0 0
    %73 = vmatpush1.bf16.msra.mxu0 0
    %74 = vmatprep.subr.bf16.mxu0 0
    %75 = vmatpush1.bf16.msra.mxu0 %v58
    %76 = vmatprep.subr.bf16.mxu0 0
    %77 = vmatpush2.bf16.msra.mxu0 0
    %78 = vmatprep.subr.bf16.mxu0 0
    %79 = vmatpush2.bf16.msra.mxu0 0
    %80 = vmatprep.subr.bf16.mxu0 0
    %81 = vmatpush2.bf16.msra.mxu0 0
    %82 = vmatprep.subr.bf16.mxu0 0
    %83 = vmatpush2.bf16.msra.mxu0 0
    %84 = vmatprep.subr.bf16.mxu0 0
    %85 = vmatpush2.bf16.msra.mxu0 0
    %86 = vmatprep.subr.bf16.mxu0 0
    %87 = vmatpush2.bf16.msra.mxu0 0
    %88 = vmatprep.subr.bf16.mxu0 0
    %89 = vmatpush2.bf16.msra.mxu0 0
    %90 = vmatprep.subr.bf16.mxu0 0
    %91 = vmatpush2.bf16.msra.mxu0 0
    %92 = vmatprep.mubr.bf16.mxu0 0
    %93 = vmatmul.mubr.bf16.gmra.mxu0 %v51
    %v94 = vpop.f32.mrf.mxu0
    %v95 = vadd.f32 %v37, %v94
    %v96 = vpop.f32.mrf.mxu0
    %v97 = vpop.f32.mrf.mxu0
    %v98 = vadd.f32 %v42, %v97
    %v99 = vpop.f32.mrf.mxu0
    %100 = vdwg.mxu0
    %v101 = vmax.f32 %v95, 0.0
    %v102 = vmax.f32 %v98, 0.0
    %v103 = vpack.c.bf16 %v102, %v101
    %v104 = vld [vmem:[%s3] sm:$0xf]
    %v105 = vld [vmem:[%s3 + $0x4] sm:$0xf]
    %v106 = vld [vmem:[%s3 + $0x8] sm:$0x3]
    %v107 = vld [vmem:[%s4] sm:$0xff]
    %v108 = vld [vmem:[%s4 + $0x8] sm:$0xff]
    %v109 = vld [vmem:[%s4 + $0x10] sm:$0xf]
    %111 = vset.pattern.permute.xlu0 0
    %112 = vperm.xlu0 %111, %v107
    %v113 = vpop.permute.xlu0 %112
    %116 = vset.pattern.permute.xlu0 0
    %117 = vperm.xlu0 %116, %v108
    %v118 = vpop.permute.xlu0 %117
    %121 = vset.pattern.permute.xlu0 0
    %122 = vperm.xlu0 %121, %v109
    %v123 = vpop.permute.xlu0 %122
    %v128 = vunpack.c.l.b16 %v104
    %v129 = vunpack.c.l.b16 %v105
    %v130 = vunpack.c.l.b16 %v106
    %v131 = vpack.c.b16 %v129, %v128
    %v132 = vpack.c.b16 %v130, %v130
    %vm133 = vcmask 80896
    %v135 = vsel %vm133, %v131, 0
    %v138 = vsel %vm133, %v132, 0
    %vm140 = vcmask 1044480
    %v142 = vsel %vm140, %v103, 0
    %144 = vmatprep.subr.bf16.mxu0 0
    %145 = vmatpush1.bf16.msra.mxu0 0
    %146 = vmatprep.subr.bf16.mxu0 0
    %147 = vmatpush1.bf16.msra.mxu0 0
    %148 = vmatprep.subr.bf16.mxu0 0
    %149 = vmatpush1.bf16.msra.mxu0 0
    %150 = vmatprep.subr.bf16.mxu0 0
    %151 = vmatpush1.bf16.msra.mxu0 0
    %152 = vmatprep.subr.bf16.mxu0 0
    %153 = vmatpush1.bf16.msra.mxu0 0
    %154 = vmatprep.subr.bf16.mxu0 0
    %155 = vmatpush1.bf16.msra.mxu0 0
    %156 = vmatprep.subr.bf16.mxu0 0
    %157 = vmatpush1.bf16.msra.mxu0 0
    %158 = vmatprep.subr.bf16.mxu0 0
    %159 = vmatpush1.bf16.msra.mxu0 %v142
    %160 = vmatprep.subr.bf16.mxu0 0
    %161 = vmatpush2.bf16.msra.mxu0 0
    %162 = vmatprep.subr.bf16.mxu0 0
    %163 = vmatpush2.bf16.msra.mxu0 0
    %164 = vmatprep.subr.bf16.mxu0 0
    %165 = vmatpush2.bf16.msra.mxu0 0
    %166 = vmatprep.subr.bf16.mxu0 0
    %167 = vmatpush2.bf16.msra.mxu0 0
    %168 = vmatprep.subr.bf16.mxu0 0
    %169 = vmatpush2.bf16.msra.mxu0 0
    %170 = vmatprep.subr.bf16.mxu0 0
    %171 = vmatpush2.bf16.msra.mxu0 0
    %172 = vmatprep.subr.bf16.mxu0 0
    %173 = vmatpush2.bf16.msra.mxu0 0
    %174 = vmatprep.subr.bf16.mxu0 0
    %175 = vmatpush2.bf16.msra.mxu0 0
    %176 = vmatprep.mubr.bf16.mxu0 0
    %177 = vmatmul.mubr.bf16.gmra.mxu0 %v135
    %v178 = vpop.f32.mrf.mxu0
    %v179 = vadd.f32 %v113, %v178
    %v180 = vpop.f32.mrf.mxu0
    %v181 = vpop.f32.mrf.mxu0
    %v182 = vadd.f32 %v118, %v181
    %v183 = vpop.f32.mrf.mxu0
    %184 = vmatprep.mubr.bf16.mxu0 0
    %185 = vmatmul.mubr.bf16.gmra.mxu0 %v138
    %v186 = vpop.f32.mrf.mxu0
    %v187 = vadd.f32 %v123, %v186
    %v188 = vpop.f32.mrf.mxu0
    %v189 = vpop.f32.mrf.mxu0
    %v190 = vpop.f32.mrf.mxu0
    %191 = vdwg.mxu0
    %v192 = vmax.f32 %v179, 0.0
    %v193 = vmax.f32 %v182, 0.0
    %v194 = vmax.f32 %v187, 0.0
    %v195 = vpack.c.bf16 %v193, %v192
    %v196 = vpack.c.bf16 %v194, %v194
    %v197 = vld [vmem:[%s5] sm:$0x7]
    %v198 = vld [vmem:[%s6] sm:$0x1f]
    %200 = vset.pattern.permute.xlu0 0
    %201 = vperm.xlu0 %200, %v198
    %v202 = vpop.permute.xlu0 %201
    %vm204 = vcmask 162816
    %v206 = vsel %vm204, %v197, 0
    %vm208 = vcmask 1041408
    %v210 = vsel %vm208, %v196, 0
    %212 = vmatprep.subr.bf16.mxu0 0
    %213 = vmatpush1.bf16.msra.mxu0 0
    %214 = vmatprep.subr.bf16.mxu0 0
    %215 = vmatpush1.bf16.msra.mxu0 0
    %216 = vmatprep.subr.bf16.mxu0 0
    %217 = vmatpush1.bf16.msra.mxu0 0
    %218 = vmatprep.subr.bf16.mxu0 0
    %219 = vmatpush1.bf16.msra.mxu0 0
    %220 = vmatprep.subr.bf16.mxu0 0
    %221 = vmatpush1.bf16.msra.mxu0 0
    %222 = vmatprep.subr.bf16.mxu0 0
    %223 = vmatpush1.bf16.msra.mxu0 0
    %224 = vmatprep.subr.bf16.mxu0 0
    %225 = vmatpush1.bf16.msra.mxu0 %v210
    %226 = vmatprep.subr.bf16.mxu0 0
    %227 = vmatpush1.bf16.msra.mxu0 %v195
    %228 = vmatprep.subr.bf16.mxu0 0
    %229 = vmatpush2.bf16.msra.mxu0 0
    %230 = vmatprep.subr.bf16.mxu0 0
    %231 = vmatpush2.bf16.msra.mxu0 0
    %232 = vmatprep.subr.bf16.mxu0 0
    %233 = vmatpush2.bf16.msra.mxu0 0
    %234 = vmatprep.subr.bf16.mxu0 0
    %235 = vmatpush2.bf16.msra.mxu0 0
    %236 = vmatprep.subr.bf16.mxu0 0
    %237 = vmatpush2.bf16.msra.mxu0 0
    %238 = vmatprep.subr.bf16.mxu0 0
    %239 = vmatpush2.bf16.msra.mxu0 0
    %240 = vmatprep.subr.bf16.mxu0 0
    %241 = vmatpush2.bf16.msra.mxu0 0
    %242 = vmatprep.subr.bf16.mxu0 0
    %243 = vmatpush2.bf16.msra.mxu0 0
    %244 = vmatprep.mubr.bf16.mxu0 0
    %245 = vmatmul.mubr.bf16.gmra.mxu0 %v206
    %v246 = vpop.f32.mrf.mxu0
    %v247 = vadd.f32 %v202, %v246
    %v248 = vpop.f32.mrf.mxu0
    %v249 = vpop.f32.mrf.mxu0
    %v250 = vpop.f32.mrf.mxu0
    %251 = vdwg.mxu0
    %vm252 = vcmask 61440
    %253 = vst.msk [vmem:[#allocation2] sm:$0x1f] %vm252, %v247
    // Predicated region
    $region30: #{mlp_forward_feature_major.1} parent=1 // pred_check
      _
    $region31: #{mlp_forward_feature_major.1} parent=1 // pred_check_branch
      %255 = sbr.rel (0) target = $region33
    $region32: #{mlp_forward_feature_major.1} parent=1 // pred_region
      %s257 = ssub.s32 128, 128
      %258 = vsyncadd [#allocation3], %s257
      %s260 = sshll.u32 [#allocation2], 4
      %s261 = int_to_ptr.vmem [resolvable:$true] %s260
      %263 = dma.vmem_to_hbm [thread:$0]  %s261, 128, %s7, [#allocation3]
    $region33: #{mlp_forward_feature_major.1} parent=1 // pred_fallthru
      _
    // Predicated region
    $region34: #{mlp_forward_feature_major.1} parent=1 // pred_check
      _
    $region35: #{mlp_forward_feature_major.1} parent=1 // pred_check_branch
      %265 = sbr.rel (0) target = $region37
    $region36: #{mlp_forward_feature_major.1} parent=1 // pred_region
      %266 = dma.done [#allocation3], 128
    $region37: #{mlp_forward_feature_major.1} parent=1 // pred_fallthru
      _
    %267 = vsyncpa [#allocation3], 1

</llo_original>
